<compile_context>
chip_gen: v7x
topology: tpu7x:2x2x1
jax: 0.10.0
libtpu: 0.0.40
codegen_flags: <defaults>
</compile_context>

<pallas_src>
import functools

import jax
import jax.numpy as jnp
from jax.experimental import pallas as pl
from jax.experimental.pallas import tpu as pltpu

HIDDEN = 768       # SwinConfig.hidden_size (in_features of the embedding Linear)
EMB = 64           # embedding_size
N_CLASSES = 100    # classifier head exists in the module but is unused in forward()


def _round_up(x, m):
    return ((x + m - 1) // m) * m


def _tpu_budget():
    """Per-generation (per-buffer input-tile budget, vmem_limit_bytes, two_tensorcores)."""
    kind = ""
    try:
        kind = jax.devices()[0].device_kind.lower()
    except Exception:
        pass
    if "v7" in kind:
        # 64 MiB VMEM/TC, ~3.2 TB/s HBM: biggish tiles to amortize per-step overhead,
        # explicit headroom under the physical cap, 2 TensorCores per chip.
        return 14 * 1024 * 1024, 48 * 1024 * 1024, True
    if "v6" in kind:
        # 128 MiB physical VMEM (32 MiB default scoped), ~1.4 TB/s HBM.
        return 24 * 1024 * 1024, 80 * 1024 * 1024, False
    # v5e / unknown: ~820 GB/s HBM, only 16 MiB *default scoped* VMEM -> raise the
    # limit explicitly but keep tiles modest (per-step overhead is already small).
    return 10 * 1024 * 1024, 40 * 1024 * 1024, False


def _pool_embed_kernel(h_ref, w_ref, b_ref, o_ref, *, inv_len, slab):
    # h_ref: (TB, L, H)   w_ref: (H, Epad)   b_ref: (1, Epad)   o_ref: (TB, Epad)
    L = h_ref.shape[1]
    # AdaptiveAvgPool1d(1) over L == mean.  Do a pure add-reduction here (1/L is
    # folded into the tiny (TB, Epad) epilogue) in sublane-aligned slabs so at most
    # one (TB, slab, H) f32 intermediate is ever live -- never a full-tile f32 copy
    # of the (TB, L, H) block.  Accumulation stays f32 even for bf16 inputs.
    acc = None
    for l0 in range(0, L, slab):
        part = jnp.sum(h_ref[:, l0:min(l0 + slab, L), :].astype(jnp.float32), axis=1)
        acc = part if acc is None else acc + part
    # nn.Linear: y = pooled @ W^T + b, with W pre-transposed to (H, Epad) in the
    # wrapper -> canonical MXU contraction, no per-step RHS relayout.
    out = jnp.dot(acc, w_ref[...], preferred_element_type=jnp.float32)   # (TB, Epad)
    o_ref[...] = (out * inv_len + b_ref[...]).astype(o_ref.dtype)


def pool_and_embed(hidden_states, w_embed, b_embed, *, block_rows=None):
    """Fused (mean over seq) + nn.Linear head, as a Pallas TPU kernel.

    hidden_states: (B, L, H) f32 or bf16 -- backbone hidden_states[-1]
    w_embed:       (E, H)    f32         -- torch nn.Linear weight layout (out, in)
    b_embed:       (E,)      f32
    returns:       (B, E)    f32         -- the module's forward() output
    """
    B, L, H = hidden_states.shape
    E = w_embed.shape[0]
    E_pad = _round_up(E, 128)                     # lane-dense output stores
    itemsize = hidden_states.dtype.itemsize
    sublane = 8 * (4 // itemsize)                 # rows per packed sublane group
    budget, vmem_limit, two_cores = _tpu_budget()

    # ---- batch tile: biggest multiple of 8 whose *sublane-padded* double-buffered
    # footprint fits the per-generation budget.
    if block_rows is not None:
        tb = block_rows
    elif B <= 8:
        tb = B                                    # single exact block, no masking
    else:
        padded_L = _round_up(L, sublane)          # what the tile really costs in VMEM
        row_bytes = padded_L * H * itemsize
        tb = max(8, (budget // row_bytes) // 8 * 8)
        if two_cores:
            # Keep >= 2 grid steps so both TensorCores get work on v7x.
            tb = min(tb, _round_up(-(-B // 2), 8))
        tb = min(tb, _round_up(B, 8))

    grid = (pl.cdiv(B, tb),)                      # ragged last block: Pallas masks writes

    # One-time param prep (constant-foldable): transpose to (H, E) and zero-pad E->128.
    w_t = jnp.zeros((H, E_pad), jnp.float32).at[:, :E].set(w_embed.T.astype(jnp.float32))
    b_p = jnp.zeros((1, E_pad), jnp.float32).at[:, :E].set(b_embed.astype(jnp.float32)[None, :])

    kernel = functools.partial(_pool_embed_kernel, inv_len=float(1.0 / L), slab=sublane)

    out = pl.pallas_call(
        kernel,
        out_shape=jax.ShapeDtypeStruct((B, E_pad), jnp.float32),
        grid=grid,
        in_specs=[
            pl.BlockSpec((tb, L, H), lambda i: (i, 0, 0)),   # streamed over batch
            pl.BlockSpec((H, E_pad), lambda i: (0, 0)),      # resident weight
            pl.BlockSpec((1, E_pad), lambda i: (0, 0)),      # resident bias
        ],
        out_specs=pl.BlockSpec((tb, E_pad), lambda i: (i, 0)),
        compiler_params=pltpu.CompilerParams(
            dimension_semantics=("parallel",),               # shard over 2 TCs on v7x
            vmem_limit_bytes=int(vmem_limit),
        ),
        cost_estimate=pl.CostEstimate(
            flops=2 * B * H * E_pad + B * L * H,
            transcendentals=0,
            bytes_accessed=(B * L * H * itemsize
                            + H * E_pad * 4 + E_pad * 4 + B * E_pad * 4),
        ),
    )(hidden_states, w_t, b_p)

    return out[:, :E] if E_pad != E else out


if __name__ == "__main__":
    key = jax.random.PRNGKey(0)
    k_h, k_w, k_b = jax.random.split(key, 3)

    B, L = 2, 8   # small batch / sequence length for the demo

    # Synthetic stand-in for backbone(x).hidden_states[-1]
    hidden_f32 = jax.random.normal(k_h, (B, L, HIDDEN), dtype=jnp.float32)
    hidden_bf16 = hidden_f32.astype(jnp.bfloat16)   # preferred input dtype (halves HBM bytes)

    # Deterministic parameter init for nn.Linear(HIDDEN, EMB)
    w_embed = jax.random.normal(k_w, (EMB, HIDDEN), dtype=jnp.float32) * (1.0 / jnp.sqrt(HIDDEN))
    b_embed = jax.random.normal(k_b, (EMB,), dtype=jnp.float32) * 0.01

    def ref_forward(h):
        pooled = jnp.mean(h.astype(jnp.float32), axis=1)
        return pooled @ w_embed.T + b_embed

    # f32 input path
    out_f32 = jax.block_until_ready(pool_and_embed(hidden_f32, w_embed, b_embed))
    assert out_f32.shape == (B, EMB)
    assert jnp.allclose(out_f32, ref_forward(hidden_f32), atol=1e-3, rtol=1e-3), "f32 mismatch"

    # bf16 input path (accumulation stays f32 inside the kernel)
    out_bf16 = jax.block_until_ready(pool_and_embed(hidden_bf16, w_embed, b_embed))
    assert out_bf16.shape == (B, EMB)
    assert jnp.allclose(out_bf16, ref_forward(hidden_bf16), atol=1e-3, rtol=1e-3), "bf16 mismatch"

    print("KERNEL_OK")
</pallas_src>

<mosaic_0001>
module attributes {stable_mosaic.version = 11 : i64} {
  func.func @_pool_embed_kernel(%arg0: i32, %arg1: memref<2x8x768xf32, #tpu.memory_space<vmem>>, %arg2: memref<768x128xf32, #tpu.memory_space<vmem>>, %arg3: memref<1x128xf32, #tpu.memory_space<vmem>>, %arg4: memref<2x128xf32, #tpu.memory_space<vmem>>) attributes {dimension_semantics = [#tpu.dimension_semantics<parallel>], iteration_bounds = array<i64: 1>, scalar_prefetch = 0 : i64, scratch_operands = 0 : i64, tpu.core_type = #tpu.core_type<tc>, window_params = [{transform_indices = @transform_0, window_bounds = array<i64: 2, 8, 768>}, {pipeline_mode = #tpu.pipeline_mode<synchronous>, transform_indices = @transform_1, window_bounds = array<i64: 768, 128>}, {pipeline_mode = #tpu.pipeline_mode<synchronous>, transform_indices = @transform_2, window_bounds = array<i64: 1, 128>}, {transform_indices = @transform_3, window_bounds = array<i64: 2, 128>}]} {
    %c0 = arith.constant 0 : index
    %c0_0 = arith.constant 0 : index
    %c0_1 = arith.constant 0 : index
    %0 = vector.load %arg1[%c0, %c0_0, %c0_1] : memref<2x8x768xf32, #tpu.memory_space<vmem>>, vector<2x8x768xf32>
    %cst = arith.constant dense<0.000000e+00> : vector<2x768xf32>
    %1 = vector.multi_reduction <add>, %0, %cst [1] : vector<2x8x768xf32> to vector<2x768xf32>
    %c0_2 = arith.constant 0 : index
    %c0_3 = arith.constant 0 : index
    %2 = vector.load %arg2[%c0_2, %c0_3] : memref<768x128xf32, #tpu.memory_space<vmem>>, vector<768x128xf32>
    %cst_4 = arith.constant dense<0.000000e+00> : vector<2x128xf32>
    %3 = tpu.matmul %1, %2, %cst_4 {dimension_numbers = #tpu.dot_dimension_numbers<[1], [0], [0], [1], [0, 0, 1, 1], [], []>} : vector<2x768xf32>, vector<768x128xf32>, vector<2x128xf32> -> vector<2x128xf32>
    %cst_5 = arith.constant 1.250000e-01 : f32
    %4 = vector.broadcast %cst_5 : f32 to vector<2x128xf32>
    %5 = arith.mulf %3, %4 : vector<2x128xf32>
    %c0_6 = arith.constant 0 : index
    %c0_7 = arith.constant 0 : index
    %6 = vector.load %arg3[%c0_6, %c0_7] : memref<1x128xf32, #tpu.memory_space<vmem>>, vector<1x128xf32>
    %7 = vector.broadcast %6 : vector<1x128xf32> to vector<2x128xf32>
    %8 = arith.addf %5, %7 : vector<2x128xf32>
    %c0_8 = arith.constant 0 : index
    %c0_9 = arith.constant 0 : index
    %9 = vector.load %arg4[%c0_8, %c0_9] : memref<2x128xf32, #tpu.memory_space<vmem>>, vector<2x128xf32>
    tpu.vector_store %arg4[%c0_8, %c0_9], %8 {strides = array<i32>} : memref<2x128xf32, #tpu.memory_space<vmem>>, vector<2x128xf32>,
    return
  }
  func.func @transform_0(%arg0: i32) -> (i32, i32, i32) {
    %c0_i32 = arith.constant 0 : i32
    %c0_i32_0 = arith.constant 0 : i32
    %c0_i32_1 = arith.constant 0 : i32
    return %arg0, %c0_i32, %c0_i32_0 : i32, i32, i32
  }
  func.func @transform_1(%arg0: i32) -> (i32, i32) {
    %c0_i32 = arith.constant 0 : i32
    %c0_i32_0 = arith.constant 0 : i32
    %c0_i32_1 = arith.constant 0 : i32
    return %c0_i32, %c0_i32_0 : i32, i32
  }
  func.func @transform_2(%arg0: i32) -> (i32, i32) {
    %c0_i32 = arith.constant 0 : i32
    %c0_i32_0 = arith.constant 0 : i32
    %c0_i32_1 = arith.constant 0 : i32
    return %c0_i32, %c0_i32_0 : i32, i32
  }
  func.func @transform_3(%arg0: i32) -> (i32, i32) {
    %c0_i32 = arith.constant 0 : i32
    %c0_i32_0 = arith.constant 0 : i32
    return %arg0, %c0_i32 : i32, i32
  }
}

</mosaic_0001>

<llo_original>
// kernel: tpu_custom_call.1
$region0: #{tpu_custom_call.1}
  #allocation0 [shape = 'u32[]', space=smem, size = 0x4, offset = 0x4, fixed_abs, tag = 'smem constant byte address 0x4 - core index']
  #allocation1 [shape = 'u32[144,128]{1,0:T(1,128)}', space=vmem, size = 0x12000, scoped, tag = 'internal scratch']
  %s0 = inlined_call_operand.hbm [shape: f32[2,8,768], index: 0, kind: input, shape index: {}]
  %s1 = inlined_call_operand.hbm [shape: f32[768,128], index: 1, kind: input, shape index: {}]
  %s2 = inlined_call_operand.vmem [shape: f32[1,128], index: 2, kind: input, shape index: {}]
  %s3 = inlined_call_operand.hbm [shape: f32[2,128], index: 3, kind: output, shape index: {}]
  %s4 = sld [smem:[#allocation0]]
  $region30: #{tpu_custom_call.1} parent=0
    _
  %s6 = ssub.s32 1, %s4
  %s7 = scalar_select 0, %s6, %s4
  $region1: #{tpu_custom_call.1} parent=0
    #allocation2 [shape = 'u8[49152]{0}', space=vmem, size = 0xc000, scoped, tag = 'input window, operand 0, single buffered']
    #allocation3 [shape = 's32[1]{0}', space=sflag, size = 0x4, scoped, tag = 'scoped memory for tpu_custom_call.1']
    #allocation4 [shape = 's32[1]{0}', space=sflag, size = 0x4, scoped, tag = 'scoped memory for tpu_custom_call.1']
    #allocation5 [shape = 'u8[393216]{0}', space=vmem, size = 0x60000, scoped, tag = 'input window, operand 1, single buffered']
    #allocation6 [shape = 's32[1]{0}', space=sflag, size = 0x4, scoped, tag = 'scoped memory for tpu_custom_call.1']
    #allocation7 [shape = 'u8[1024]{0}', space=vmem, size = 0x400, scoped, tag = 'output window, operand 0, single buffered']
    %8 = vsyncpa [#allocation3], 0
    %9 = vsyncpa [#allocation6], 0
    %10 = vsyncpa [#allocation4], 0
    // Predicated region
    $region2: #{tpu_custom_call.1} parent=1 // pred_check
      _
    $region3: #{tpu_custom_call.1} parent=1 // pred_check_branch
      %12 = sbr.rel (0) target = $region5
    $region4: #{tpu_custom_call.1} parent=1 // pred_region
      %s14 = ssub.s32 1536, 1536
      %15 = vsyncadd [#allocation3], %s14
      %s16 = sshll.u32 [#allocation2], 4
      %s17 = int_to_ptr.vmem [resolvable:$true] %s16
      %22 = dma.hbm_to_vmem [thread:$0]  %s0, 1536, %s17, [#allocation3], 768, 768, 48
    $region5: #{tpu_custom_call.1} parent=1 // pred_fallthru
      _
    // Predicated region
    $region6: #{tpu_custom_call.1} parent=1 // pred_check
      _
    $region7: #{tpu_custom_call.1} parent=1 // pred_check_branch
      %24 = sbr.rel (0) target = $region9
    $region8: #{tpu_custom_call.1} parent=1 // pred_region
      %s26 = ssub.s32 12288, 12288
      %27 = vsyncadd [#allocation6], %s26
      %s28 = sshll.u32 [#allocation5], 4
      %s29 = int_to_ptr.vmem [resolvable:$true] %s28
      %34 = dma.hbm_to_vmem [thread:$0]  %s1, 12288, %s29, [#allocation6], 128, 128, 8
    $region9: #{tpu_custom_call.1} parent=1 // pred_fallthru
      _
    // Predicated region
    $region10: #{tpu_custom_call.1} parent=1 // pred_check
      _
    $region11: #{tpu_custom_call.1} parent=1 // pred_check_branch
      %36 = sbr.rel (0) target = $region13
    $region12: #{tpu_custom_call.1} parent=1 // pred_region
      _
    $region13: #{tpu_custom_call.1} parent=1 // pred_fallthru
      _
    // Predicated region
    $region14: #{tpu_custom_call.1} parent=1 // pred_check
      _
    $region15: #{tpu_custom_call.1} parent=1 // pred_check_branch
      %38 = sbr.rel (0) target = $region17
    $region16: #{tpu_custom_call.1} parent=1 // pred_region
      %39 = dma.done [#allocation3], 1536
    $region17: #{tpu_custom_call.1} parent=1 // pred_fallthru
      _
    // Predicated region
    $region18: #{tpu_custom_call.1} parent=1 // pred_check
      _
    $region19: #{tpu_custom_call.1} parent=1 // pred_check_branch
      %41 = sbr.rel (0) target = $region21
    $region20: #{tpu_custom_call.1} parent=1 // pred_region
      %42 = dma.done [#allocation6], 12288
    $region21: #{tpu_custom_call.1} parent=1 // pred_fallthru
      _
    %v43 = vld [vmem:[#allocation2] sm:$0xff]
    %v44 = vld [vmem:[#allocation2 + $0x8] sm:$0xff]
    %v45 = vld [vmem:[#allocation2 + $0x10] sm:$0xff]
    %v46 = vld [vmem:[#allocation2 + $0x18] sm:$0xff]
    %v47 = vld [vmem:[#allocation2 + $0x20] sm:$0xff]
    %v48 = vld [vmem:[#allocation2 + $0x28] sm:$0xff]
    %v49 = vld [vmem:[#allocation2 + $0x30] sm:$0xff]
    %v50 = vld [vmem:[#allocation2 + $0x38] sm:$0xff]
    %v51 = vld [vmem:[#allocation2 + $0x40] sm:$0xff]
    %v52 = vld [vmem:[#allocation2 + $0x48] sm:$0xff]
    %v53 = vld [vmem:[#allocation2 + $0x50] sm:$0xff]
    %v54 = vld [vmem:[#allocation2 + $0x58] sm:$0xff]
    %v55 = vrot.slane %v43, 4
    %v56 = vadd.f32 %v43, %v55
    %v57 = vrot.slane %v56, 2
    %v58 = vadd.f32 %v56, %v57
    %v59 = vrot.slane %v58, 1
    %v60 = vadd.f32 %v58, %v59
    %v61 = vrot.slane %v44, 4
    %v62 = vadd.f32 %v44, %v61
    %v63 = vrot.slane %v62, 2
    %v64 = vadd.f32 %v62, %v63
    %v65 = vrot.slane %v64, 1
    %v66 = vadd.f32 %v64, %v65
    %v67 = vrot.slane %v45, 4
    %v68 = vadd.f32 %v45, %v67
    %v69 = vrot.slane %v68, 2
    %v70 = vadd.f32 %v68, %v69
    %v71 = vrot.slane %v70, 1
    %v72 = vadd.f32 %v70, %v71
    %v73 = vrot.slane %v46, 4
    %v74 = vadd.f32 %v46, %v73
    %v75 = vrot.slane %v74, 2
    %v76 = vadd.f32 %v74, %v75
    %v77 = vrot.slane %v76, 1
    %v78 = vadd.f32 %v76, %v77
    %v79 = vrot.slane %v47, 4
    %v80 = vadd.f32 %v47, %v79
    %v81 = vrot.slane %v80, 2
    %v82 = vadd.f32 %v80, %v81
    %v83 = vrot.slane %v82, 1
    %v84 = vadd.f32 %v82, %v83
    %v85 = vrot.slane %v48, 4
    %v86 = vadd.f32 %v48, %v85
    %v87 = vrot.slane %v86, 2
    %v88 = vadd.f32 %v86, %v87
    %v89 = vrot.slane %v88, 1
    %v90 = vadd.f32 %v88, %v89
    %v91 = vrot.slane %v49, 4
    %v92 = vadd.f32 %v49, %v91
    %v93 = vrot.slane %v92, 2
    %v94 = vadd.f32 %v92, %v93
    %v95 = vrot.slane %v94, 1
    %v96 = vadd.f32 %v94, %v95
    %v97 = vrot.slane %v50, 4
    %v98 = vadd.f32 %v50, %v97
    %v99 = vrot.slane %v98, 2
    %v100 = vadd.f32 %v98, %v99
    %v101 = vrot.slane %v100, 1
    %v102 = vadd.f32 %v100, %v101
    %v103 = vrot.slane %v51, 4
    %v104 = vadd.f32 %v51, %v103
    %v105 = vrot.slane %v104, 2
    %v106 = vadd.f32 %v104, %v105
    %v107 = vrot.slane %v106, 1
    %v108 = vadd.f32 %v106, %v107
    %v109 = vrot.slane %v52, 4
    %v110 = vadd.f32 %v52, %v109
    %v111 = vrot.slane %v110, 2
    %v112 = vadd.f32 %v110, %v111
    %v113 = vrot.slane %v112, 1
    %v114 = vadd.f32 %v112, %v113
    %v115 = vrot.slane %v53, 4
    %v116 = vadd.f32 %v53, %v115
    %v117 = vrot.slane %v116, 2
    %v118 = vadd.f32 %v116, %v117
    %v119 = vrot.slane %v118, 1
    %v120 = vadd.f32 %v118, %v119
    %v121 = vrot.slane %v54, 4
    %v122 = vadd.f32 %v54, %v121
    %v123 = vrot.slane %v122, 2
    %v124 = vadd.f32 %v122, %v123
    %v125 = vrot.slane %v124, 1
    %v126 = vadd.f32 %v124, %v125
    %v127 = vld [vmem:[#allocation5] sm:$0xff]
    %v128 = vld [vmem:[#allocation5 + $0x8] sm:$0xff]
    %v129 = vld [vmem:[#allocation5 + $0x10] sm:$0xff]
    %v130 = vld [vmem:[#allocation5 + $0x18] sm:$0xff]
    %v131 = vld [vmem:[#allocation5 + $0x20] sm:$0xff]
    %v132 = vld [vmem:[#allocation5 + $0x28] sm:$0xff]
    %v133 = vld [vmem:[#allocation5 + $0x30] sm:$0xff]
    %v134 = vld [vmem:[#allocation5 + $0x38] sm:$0xff]
    %v135 = vld [vmem:[#allocation5 + $0x40] sm:$0xff]
    %v136 = vld [vmem:[#allocation5 + $0x48] sm:$0xff]
    %v137 = vld [vmem:[#allocation5 + $0x50] sm:$0xff]
    %v138 = vld [vmem:[#allocation5 + $0x58] sm:$0xff]
    %v139 = vld [vmem:[#allocation5 + $0x60] sm:$0xff]
    %v140 = vld [vmem:[#allocation5 + $0x68] sm:$0xff]
    %v141 = vld [vmem:[#allocation5 + $0x70] sm:$0xff]
    %v142 = vld [vmem:[#allocation5 + $0x78] sm:$0xff]
    %v143 = vld [vmem:[#allocation5 + $0x80] sm:$0xff]
    %v144 = vld [vmem:[#allocation5 + $0x88] sm:$0xff]
    %v145 = vld [vmem:[#allocation5 + $0x90] sm:$0xff]
    %v146 = vld [vmem:[#allocation5 + $0x98] sm:$0xff]
    %v147 = vld [vmem:[#allocation5 + $0xa0] sm:$0xff]
    %v148 = vld [vmem:[#allocation5 + $0xa8] sm:$0xff]
    %v149 = vld [vmem:[#allocation5 + $0xb0] sm:$0xff]
    %v150 = vld [vmem:[#allocation5 + $0xb8] sm:$0xff]
    %v151 = vld [vmem:[#allocation5 + $0xc0] sm:$0xff]
    %v152 = vld [vmem:[#allocation5 + $0xc8] sm:$0xff]
    %v153 = vld [vmem:[#allocation5 + $0xd0] sm:$0xff]
    %v154 = vld [vmem:[#allocation5 + $0xd8] sm:$0xff]
    %v155 = vld [vmem:[#allocation5 + $0xe0] sm:$0xff]
    %v156 = vld [vmem:[#allocation5 + $0xe8] sm:$0xff]
    %v157 = vld [vmem:[#allocation5 + $0xf0] sm:$0xff]
    %v158 = vld [vmem:[#allocation5 + $0xf8] sm:$0xff]
    %v159 = vld [vmem:[#allocation5 + $0x100] sm:$0xff]
    %v160 = vld [vmem:[#allocation5 + $0x108] sm:$0xff]
    %v161 = vld [vmem:[#allocation5 + $0x110] sm:$0xff]
    %v162 = vld [vmem:[#allocation5 + $0x118] sm:$0xff]
    %v163 = vld [vmem:[#allocation5 + $0x120] sm:$0xff]
    %v164 = vld [vmem:[#allocation5 + $0x128] sm:$0xff]
    %v165 = vld [vmem:[#allocation5 + $0x130] sm:$0xff]
    %v166 = vld [vmem:[#allocation5 + $0x138] sm:$0xff]
    %v167 = vld [vmem:[#allocation5 + $0x140] sm:$0xff]
    %v168 = vld [vmem:[#allocation5 + $0x148] sm:$0xff]
    %v169 = vld [vmem:[#allocation5 + $0x150] sm:$0xff]
    %v170 = vld [vmem:[#allocation5 + $0x158] sm:$0xff]
    %v171 = vld [vmem:[#allocation5 + $0x160] sm:$0xff]
    %v172 = vld [vmem:[#allocation5 + $0x168] sm:$0xff]
    %v173 = vld [vmem:[#allocation5 + $0x170] sm:$0xff]
    %v174 = vld [vmem:[#allocation5 + $0x178] sm:$0xff]
    %v175 = vld [vmem:[#allocation5 + $0x180] sm:$0xff]
    %v176 = vld [vmem:[#allocation5 + $0x188] sm:$0xff]
    %v177 = vld [vmem:[#allocation5 + $0x190] sm:$0xff]
    %v178 = vld [vmem:[#allocation5 + $0x198] sm:$0xff]
    %v179 = vld [vmem:[#allocation5 + $0x1a0] sm:$0xff]
    %v180 = vld [vmem:[#allocation5 + $0x1a8] sm:$0xff]
    %v181 = vld [vmem:[#allocation5 + $0x1b0] sm:$0xff]
    %v182 = vld [vmem:[#allocation5 + $0x1b8] sm:$0xff]
    %v183 = vld [vmem:[#allocation5 + $0x1c0] sm:$0xff]
    %v184 = vld [vmem:[#allocation5 + $0x1c8] sm:$0xff]
    %v185 = vld [vmem:[#allocation5 + $0x1d0] sm:$0xff]
    %v186 = vld [vmem:[#allocation5 + $0x1d8] sm:$0xff]
    %v187 = vld [vmem:[#allocation5 + $0x1e0] sm:$0xff]
    %v188 = vld [vmem:[#allocation5 + $0x1e8] sm:$0xff]
    %v189 = vld [vmem:[#allocation5 + $0x1f0] sm:$0xff]
    %v190 = vld [vmem:[#allocation5 + $0x1f8] sm:$0xff]
    %v191 = vld [vmem:[#allocation5 + $0x200] sm:$0xff]
    %v192 = vld [vmem:[#allocation5 + $0x208] sm:$0xff]
    %v193 = vld [vmem:[#allocation5 + $0x210] sm:$0xff]
    %v194 = vld [vmem:[#allocation5 + $0x218] sm:$0xff]
    %v195 = vld [vmem:[#allocation5 + $0x220] sm:$0xff]
    %v196 = vld [vmem:[#allocation5 + $0x228] sm:$0xff]
    %v197 = vld [vmem:[#allocation5 + $0x230] sm:$0xff]
    %v198 = vld [vmem:[#allocation5 + $0x238] sm:$0xff]
    %v199 = vld [vmem:[#allocation5 + $0x240] sm:$0xff]
    %v200 = vld [vmem:[#allocation5 + $0x248] sm:$0xff]
    %v201 = vld [vmem:[#allocation5 + $0x250] sm:$0xff]
    %v202 = vld [vmem:[#allocation5 + $0x258] sm:$0xff]
    %v203 = vld [vmem:[#allocation5 + $0x260] sm:$0xff]
    %v204 = vld [vmem:[#allocation5 + $0x268] sm:$0xff]
    %v205 = vld [vmem:[#allocation5 + $0x270] sm:$0xff]
    %v206 = vld [vmem:[#allocation5 + $0x278] sm:$0xff]
    %v207 = vld [vmem:[#allocation5 + $0x280] sm:$0xff]
    %v208 = vld [vmem:[#allocation5 + $0x288] sm:$0xff]
    %v209 = vld [vmem:[#allocation5 + $0x290] sm:$0xff]
    %v210 = vld [vmem:[#allocation5 + $0x298] sm:$0xff]
    %v211 = vld [vmem:[#allocation5 + $0x2a0] sm:$0xff]
    %v212 = vld [vmem:[#allocation5 + $0x2a8] sm:$0xff]
    %v213 = vld [vmem:[#allocation5 + $0x2b0] sm:$0xff]
    %v214 = vld [vmem:[#allocation5 + $0x2b8] sm:$0xff]
    %v215 = vld [vmem:[#allocation5 + $0x2c0] sm:$0xff]
    %v216 = vld [vmem:[#allocation5 + $0x2c8] sm:$0xff]
    %v217 = vld [vmem:[#allocation5 + $0x2d0] sm:$0xff]
    %v218 = vld [vmem:[#allocation5 + $0x2d8] sm:$0xff]
    %v219 = vld [vmem:[#allocation5 + $0x2e0] sm:$0xff]
    %v220 = vld [vmem:[#allocation5 + $0x2e8] sm:$0xff]
    %v221 = vld [vmem:[#allocation5 + $0x2f0] sm:$0xff]
    %v222 = vld [vmem:[#allocation5 + $0x2f8] sm:$0xff]
    %vm235 = vcmask 1041409
    %v236 = vsel %vm235, %v96, %v60
    %v237 = vsel %vm235, %v102, %v66
    %v238 = vsel %vm235, %v108, %v72
    %v239 = vsel %vm235, %v114, %v78
    %v240 = vsel %vm235, %v120, %v84
    %v241 = vsel %vm235, %v126, %v90
    %248 = vmatprep.subr.mxu0 0.0
    %249 = vmatpush1.msra.mxu0 %v127
    %250 = vmatprep.subr.mxu0 0.0
    %251 = vmatpush1.msra.mxu0 %v128
    %252 = vmatprep.subr.mxu0 0.0
    %253 = vmatpush1.msra.mxu0 %v129
    %254 = vmatprep.subr.mxu0 0.0
    %255 = vmatpush1.msra.mxu0 %v130
    %256 = vmatprep.subr.mxu0 0.0
    %257 = vmatpush1.msra.mxu0 %v131
    %258 = vmatprep.subr.mxu0 0.0
    %259 = vmatpush1.msra.mxu0 %v132
    %260 = vmatprep.subr.mxu0 0.0
    %261 = vmatpush1.msra.mxu0 %v133
    %262 = vmatprep.subr.mxu0 0.0
    %263 = vmatpush1.msra.mxu0 %v134
    %264 = vmatprep.subr.mxu0 0.0
    %265 = vmatpush1.msra.mxu0 %v135
    %266 = vmatprep.subr.mxu0 0.0
    %267 = vmatpush1.msra.mxu0 %v136
    %268 = vmatprep.subr.mxu0 0.0
    %269 = vmatpush1.msra.mxu0 %v137
    %270 = vmatprep.subr.mxu0 0.0
    %271 = vmatpush1.msra.mxu0 %v138
    %272 = vmatprep.subr.mxu0 0.0
    %273 = vmatpush1.msra.mxu0 %v139
    %274 = vmatprep.subr.mxu0 0.0
    %275 = vmatpush1.msra.mxu0 %v140
    %276 = vmatprep.subr.mxu0 0.0
    %277 = vmatpush1.msra.mxu0 %v141
    %278 = vmatprep.subr.mxu0 0.0
    %279 = vmatpush1.msra.mxu0 %v142
    %280 = vmatprep.subr.mxu0 0.0
    %281 = vmatpush1.msra.mxu0 %v143
    %282 = vmatprep.subr.mxu0 0.0
    %283 = vmatpush1.msra.mxu0 %v144
    %284 = vmatprep.subr.mxu0 0.0
    %285 = vmatpush1.msra.mxu0 %v145
    %286 = vmatprep.subr.mxu0 0.0
    %287 = vmatpush1.msra.mxu0 %v146
    %288 = vmatprep.subr.mxu0 0.0
    %289 = vmatpush1.msra.mxu0 %v147
    %290 = vmatprep.subr.mxu0 0.0
    %291 = vmatpush1.msra.mxu0 %v148
    %292 = vmatprep.subr.mxu0 0.0
    %293 = vmatpush1.msra.mxu0 %v149
    %294 = vmatprep.subr.mxu0 0.0
    %295 = vmatpush1.msra.mxu0 %v150
    %296 = vmatprep.subr.mxu0 0.0
    %297 = vmatpush1.msra.mxu0 %v151
    %298 = vmatprep.subr.mxu0 0.0
    %299 = vmatpush1.msra.mxu0 %v152
    %300 = vmatprep.subr.mxu0 0.0
    %301 = vmatpush1.msra.mxu0 %v153
    %302 = vmatprep.subr.mxu0 0.0
    %303 = vmatpush1.msra.mxu0 %v154
    %304 = vmatprep.subr.mxu0 0.0
    %305 = vmatpush1.msra.mxu0 %v155
    %306 = vmatprep.subr.mxu0 0.0
    %307 = vmatpush1.msra.mxu0 %v156
    %308 = vmatprep.subr.mxu0 0.0
    %309 = vmatpush1.msra.mxu0 %v157
    %310 = vmatprep.subr.mxu0 0.0
    %311 = vmatpush1.msra.mxu0 %v158
    %312 = vmatprep.mubr.f32.mxu0 %v237
    %313 = vmatmul.mubr.f32.gmra.mrb[0].mxu0 %v236
    %v314 = vpop.f32.mrb[0].mxu0
    %v315 = vadd.f32 0.0, %v314
    %v316 = vpop.f32.mrb[0].mxu0
    %317 = vdwg.mxu0
    %318 = vmatprep.subr.mxu0 0.0
    %319 = vmatpush1.msra.mxu0 %v159
    %320 = vmatprep.subr.mxu0 0.0
    %321 = vmatpush1.msra.mxu0 %v160
    %322 = vmatprep.subr.mxu0 0.0
    %323 = vmatpush1.msra.mxu0 %v161
    %324 = vmatprep.subr.mxu0 0.0
    %325 = vmatpush1.msra.mxu0 %v162
    %326 = vmatprep.subr.mxu0 0.0
    %327 = vmatpush1.msra.mxu0 %v163
    %328 = vmatprep.subr.mxu0 0.0
    %329 = vmatpush1.msra.mxu0 %v164
    %330 = vmatprep.subr.mxu0 0.0
    %331 = vmatpush1.msra.mxu0 %v165
    %332 = vmatprep.subr.mxu0 0.0
    %333 = vmatpush1.msra.mxu0 %v166
    %334 = vmatprep.subr.mxu0 0.0
    %335 = vmatpush1.msra.mxu0 %v167
    %336 = vmatprep.subr.mxu0 0.0
    %337 = vmatpush1.msra.mxu0 %v168
    %338 = vmatprep.subr.mxu0 0.0
    %339 = vmatpush1.msra.mxu0 %v169
    %340 = vmatprep.subr.mxu0 0.0
    %341 = vmatpush1.msra.mxu0 %v170
    %342 = vmatprep.subr.mxu0 0.0
    %343 = vmatpush1.msra.mxu0 %v171
    %344 = vmatprep.subr.mxu0 0.0
    %345 = vmatpush1.msra.mxu0 %v172
    %346 = vmatprep.subr.mxu0 0.0
    %347 = vmatpush1.msra.mxu0 %v173
    %348 = vmatprep.subr.mxu0 0.0
    %349 = vmatpush1.msra.mxu0 %v174
    %350 = vmatprep.subr.mxu0 0.0
    %351 = vmatpush1.msra.mxu0 %v175
    %352 = vmatprep.subr.mxu0 0.0
    %353 = vmatpush1.msra.mxu0 %v176
    %354 = vmatprep.subr.mxu0 0.0
    %355 = vmatpush1.msra.mxu0 %v177
    %356 = vmatprep.subr.mxu0 0.0
    %357 = vmatpush1.msra.mxu0 %v178
    %358 = vmatprep.subr.mxu0 0.0
    %359 = vmatpush1.msra.mxu0 %v179
    %360 = vmatprep.subr.mxu0 0.0
    %361 = vmatpush1.msra.mxu0 %v180
    %362 = vmatprep.subr.mxu0 0.0
    %363 = vmatpush1.msra.mxu0 %v181
    %364 = vmatprep.subr.mxu0 0.0
    %365 = vmatpush1.msra.mxu0 %v182
    %366 = vmatprep.subr.mxu0 0.0
    %367 = vmatpush1.msra.mxu0 %v183
    %368 = vmatprep.subr.mxu0 0.0
    %369 = vmatpush1.msra.mxu0 %v184
    %370 = vmatprep.subr.mxu0 0.0
    %371 = vmatpush1.msra.mxu0 %v185
    %372 = vmatprep.subr.mxu0 0.0
    %373 = vmatpush1.msra.mxu0 %v186
    %374 = vmatprep.subr.mxu0 0.0
    %375 = vmatpush1.msra.mxu0 %v187
    %376 = vmatprep.subr.mxu0 0.0
    %377 = vmatpush1.msra.mxu0 %v188
    %378 = vmatprep.subr.mxu0 0.0
    %379 = vmatpush1.msra.mxu0 %v189
    %380 = vmatprep.subr.mxu0 0.0
    %381 = vmatpush1.msra.mxu0 %v190
    %382 = vmatprep.mubr.f32.mxu0 %v239
    %383 = vmatmul.mubr.f32.gmra.mrb[0].mxu0 %v238
    %v384 = vpop.f32.mrb[0].mxu0
    %v385 = vadd.f32 %v315, %v384
    %v386 = vpop.f32.mrb[0].mxu0
    %387 = vdwg.mxu0
    %388 = vmatprep.subr.mxu0 0.0
    %389 = vmatpush1.msra.mxu0 %v191
    %390 = vmatprep.subr.mxu0 0.0
    %391 = vmatpush1.msra.mxu0 %v192
    %392 = vmatprep.subr.mxu0 0.0
    %393 = vmatpush1.msra.mxu0 %v193
    %394 = vmatprep.subr.mxu0 0.0
    %395 = vmatpush1.msra.mxu0 %v194
    %396 = vmatprep.subr.mxu0 0.0
    %397 = vmatpush1.msra.mxu0 %v195
    %398 = vmatprep.subr.mxu0 0.0
    %399 = vmatpush1.msra.mxu0 %v196
    %400 = vmatprep.subr.mxu0 0.0
    %401 = vmatpush1.msra.mxu0 %v197
    %402 = vmatprep.subr.mxu0 0.0
    %403 = vmatpush1.msra.mxu0 %v198
    %404 = vmatprep.subr.mxu0 0.0
    %405 = vmatpush1.msra.mxu0 %v199
    %406 = vmatprep.subr.mxu0 0.0
    %407 = vmatpush1.msra.mxu0 %v200
    %408 = vmatprep.subr.mxu0 0.0
    %409 = vmatpush1.msra.mxu0 %v201
    %410 = vmatprep.subr.mxu0 0.0
    %411 = vmatpush1.msra.mxu0 %v202
    %412 = vmatprep.subr.mxu0 0.0
    %413 = vmatpush1.msra.mxu0 %v203
    %414 = vmatprep.subr.mxu0 0.0
    %415 = vmatpush1.msra.mxu0 %v204
    %416 = vmatprep.subr.mxu0 0.0
    %417 = vmatpush1.msra.mxu0 %v205
    %418 = vmatprep.subr.mxu0 0.0
    %419 = vmatpush1.msra.mxu0 %v206
    %420 = vmatprep.subr.mxu0 0.0
    %421 = vmatpush1.msra.mxu0 %v207
    %422 = vmatprep.subr.mxu0 0.0
    %423 = vmatpush1.msra.mxu0 %v208
    %424 = vmatprep.subr.mxu0 0.0
    %425 = vmatpush1.msra.mxu0 %v209
    %426 = vmatprep.subr.mxu0 0.0
    %427 = vmatpush1.msra.mxu0 %v210
    %428 = vmatprep.subr.mxu0 0.0
    %429 = vmatpush1.msra.mxu0 %v211
    %430 = vmatprep.subr.mxu0 0.0
    %431 = vmatpush1.msra.mxu0 %v212
    %432 = vmatprep.subr.mxu0 0.0
    %433 = vmatpush1.msra.mxu0 %v213
    %434 = vmatprep.subr.mxu0 0.0
    %435 = vmatpush1.msra.mxu0 %v214
    %436 = vmatprep.subr.mxu0 0.0
    %437 = vmatpush1.msra.mxu0 %v215
    %438 = vmatprep.subr.mxu0 0.0
    %439 = vmatpush1.msra.mxu0 %v216
    %440 = vmatprep.subr.mxu0 0.0
    %441 = vmatpush1.msra.mxu0 %v217
    %442 = vmatprep.subr.mxu0 0.0
    %443 = vmatpush1.msra.mxu0 %v218
    %444 = vmatprep.subr.mxu0 0.0
    %445 = vmatpush1.msra.mxu0 %v219
    %446 = vmatprep.subr.mxu0 0.0
    %447 = vmatpush1.msra.mxu0 %v220
    %448 = vmatprep.subr.mxu0 0.0
    %449 = vmatpush1.msra.mxu0 %v221
    %450 = vmatprep.subr.mxu0 0.0
    %451 = vmatpush1.msra.mxu0 %v222
    %452 = vmatprep.mubr.f32.mxu0 %v241
    %453 = vmatmul.mubr.f32.gmra.mrb[0].mxu0 %v240
    %v454 = vpop.f32.mrb[0].mxu0
    %v455 = vadd.f32 %v385, %v454
    %v456 = vpop.f32.mrb[0].mxu0
    %457 = vdwg.mxu0
    %v458 = vmul.f32 %v455, 0.125
    %v459 = vld [vmem:[%s2] sm:$0x1]
    %v461 = vlaneseq
    %v462 = vshrl.u32 %v461, 7
    %v463 = vsub.s32 0, %v462
    %v464 = vrot.slane %v459, %v463
    %v466 = vadd.f32 %v458, %v464
    %467 = vst [vmem:[#allocation7] sm:$0x3] %v466
    // Predicated region
    $region22: #{tpu_custom_call.1} parent=1 // pred_check
      _
    $region23: #{tpu_custom_call.1} parent=1 // pred_check_branch
      %469 = sbr.rel (0) target = $region25
    $region24: #{tpu_custom_call.1} parent=1 // pred_region
      %s471 = ssub.s32 32, 32
      %472 = vsyncadd [#allocation4], %s471
      %s474 = sshll.u32 [#allocation7], 4
      %s475 = int_to_ptr.vmem [resolvable:$true] %s474
      %477 = dma.vmem_to_hbm [thread:$0]  %s475, 32, %s3, [#allocation4]
    $region25: #{tpu_custom_call.1} parent=1 // pred_fallthru
      _
    // Predicated region
    $region26: #{tpu_custom_call.1} parent=1 // pred_check
      _
    $region27: #{tpu_custom_call.1} parent=1 // pred_check_branch
      %479 = sbr.rel (0) target = $region29
    $region28: #{tpu_custom_call.1} parent=1 // pred_region
      %480 = dma.done [#allocation4], 32
    $region29: #{tpu_custom_call.1} parent=1 // pred_fallthru
      _
    %481 = vsyncpa [#allocation3], 1
    %482 = vsyncpa [#allocation6], 1
    %483 = vsyncpa [#allocation4], 1

</llo_original>
